<compile_context>
chip_gen: v5e
topology: v5e:2x2
jax: 0.10.0
libtpu: 0.0.40
codegen_flags: <defaults>
</compile_context>

<pallas_src>
import functools

import jax
import jax.numpy as jnp
import numpy as np
from jax.experimental import pallas as pl
from jax.experimental.pallas import tpu as pltpu

_VMEM_LIMIT_BYTES = 32 * 1024 * 1024  # raised above v5e default, safe on v7x


def _cdiv(a, b):
    return -(-a // b)


def _round_up(x, m):
    return _cdiv(x, m) * m


def _choose_l_tiling(L, K, C_total, patch_bytes, cap_lanes=1024,
                     budget_bytes=24 * 1024 * 1024):
    """Pick a lane tile TL (multiple of 128) under a VMEM working-set budget.

    Working set ~ 2 double-buffered blocks of (K*TL patches + C_total*TL out).
    Returns (TL, n_tiles, L_padded) with L_padded = n_tiles * TL >= L.
    """
    l128 = _round_up(L, 128)
    per_lane = 2 * (K * patch_bytes + C_total * 4)
    cap = max(128, min(cap_lanes, (budget_bytes // per_lane) // 128 * 128))
    n_tiles = _cdiv(l128, cap)
    tl = _round_up(_cdiv(l128, n_tiles), 128)
    return tl, n_tiles, n_tiles * tl


# ----------------------------------------------------------------------------
# Glue: im2col matching torch.nn.functional.unfold ordering (C slowest, kh, kw)
# ----------------------------------------------------------------------------
def im2col(x, kh, kw, stride, padding, dilation):
    N, C, H, W = x.shape
    xp = jnp.pad(x, ((0, 0), (0, 0), (padding, padding), (padding, padding)))
    Hp, Wp = H + 2 * padding, W + 2 * padding
    out_h = (Hp - dilation * (kh - 1) - 1) // stride + 1
    out_w = (Wp - dilation * (kw - 1) - 1) // stride + 1
    cols = []
    for i in range(kh):
        for j in range(kw):
            patch = xp[:, :,
                       i * dilation: i * dilation + stride * out_h: stride,
                       j * dilation: j * dilation + stride * out_w: stride]
            cols.append(patch)                        # (N, C, out_h, out_w)
    col = jnp.stack(cols, axis=2)                     # (N, C, kh*kw, oh, ow)
    col = col.reshape(N, C * kh * kw, out_h * out_w)  # (N, K, L)
    return col, out_h, out_w


# ----------------------------------------------------------------------------
# Pallas kernel 1: fused multi-branch kervolution + bias + partial BN stats
# ----------------------------------------------------------------------------
def _fused_kerv_kernel(patch_ref, w_ref, aux_ref, out_ref, stats_ref, *,
                       branch_specs, balance, power, gamma, l_valid, tl):
    p = patch_ref[0]                                   # (K, TL) compute dtype
    w = w_ref[...]                                     # (C_total, K)
    # One MXU matmul for all branches, f32 accumulation.
    dot = jnp.dot(w, p, preferred_element_type=jnp.float32)   # (C_total, TL)

    bias = aux_ref[:, 0:1]                             # (C_total, 1) f32
    w_sq = aux_ref[:, 1:2]                             # (C_total, 1) f32 (hoisted)

    need_p_sq = any(kt == 'gaussian' for _, _, kt in branch_specs)
    if need_p_sq:
        pf = p.astype(jnp.float32)
        p_sq = jnp.sum(pf * pf, axis=0, keepdims=True)  # (1, TL), shared

    pieces = []
    for c0, c1, kt in branch_specs:                    # static sublane slices
        d = dot[c0:c1]
        if kt == 'linear':
            o = d
        elif kt == 'polynomial':
            o = (d + balance) ** power                 # power is a Python int
        elif kt == 'gaussian':
            # ||p - w||^2 = ||p||^2 + ||w||^2 - 2 p.w (keeps the MXU matmul);
            # clamp to 0 against cancellation when p ~ w.
            dist = jnp.maximum(p_sq + w_sq[c0:c1] - 2.0 * d, 0.0)
            o = jnp.exp(-gamma * dist)
        else:
            raise NotImplementedError(kt)
        pieces.append(o)
    out = pieces[0] if len(pieces) == 1 else jnp.concatenate(pieces, axis=0)
    out = out + bias                                   # (C_total, TL) f32
    out_ref[0] = out.astype(out_ref.dtype)

    # Per-channel partial BatchNorm stats over the VALID lanes of this tile
    # (padded lanes excluded), so no extra HBM pass is needed for stats.
    lane = (jax.lax.broadcasted_iota(jnp.int32, (1, tl), 1)
            + pl.program_id(1) * tl)
    valid = (lane < l_valid).astype(jnp.float32)       # (1, TL)
    om = out * valid
    s = jnp.sum(om, axis=1, keepdims=True)             # (C_total, 1)
    ss = jnp.sum(om * om, axis=1, keepdims=True)       # (C_total, 1)
    stats_ref[0, 0] = jnp.concatenate([s, ss], axis=1)  # (C_total, 2)


def fused_kerv_bn_stats(patches, weight, aux, *, branch_specs, balance, power,
                        gamma, tl, l_valid):
    N, K, Lp = patches.shape
    C = weight.shape[0]
    n_l = Lp // tl
    kern = functools.partial(_fused_kerv_kernel, branch_specs=branch_specs,
                             balance=balance, power=power, gamma=gamma,
                             l_valid=l_valid, tl=tl)
    return pl.pallas_call(
        kern,
        out_shape=(jax.ShapeDtypeStruct((N, C, Lp), jnp.float32),
                   jax.ShapeDtypeStruct((N, n_l, C, 2), jnp.float32)),
        grid=(N, n_l),
        in_specs=[
            pl.BlockSpec((1, K, tl), lambda n, l: (n, 0, l)),
            pl.BlockSpec((C, K), lambda n, l: (0, 0)),
            pl.BlockSpec((C, 2), lambda n, l: (0, 0)),
        ],
        out_specs=(
            pl.BlockSpec((1, C, tl), lambda n, l: (n, 0, l)),
            pl.BlockSpec((1, 1, C, 2), lambda n, l: (n, l, 0, 0)),
        ),
        compiler_params=pltpu.CompilerParams(
            dimension_semantics=("parallel", "parallel"),
            vmem_limit_bytes=_VMEM_LIMIT_BYTES),
    )(patches, weight, aux)


# ----------------------------------------------------------------------------
# Pallas kernel 2: tiled BatchNorm normalize (per-channel scale/shift)
# ----------------------------------------------------------------------------
def _bn_apply_kernel(x_ref, sc_ref, o_ref):
    x = x_ref[0]                                       # (C, TL) f32
    o_ref[0] = x * sc_ref[:, 0:1] + sc_ref[:, 1:2]


def bn_apply(x, scale_shift, *, tl):
    N, C, Lp = x.shape
    n_l = Lp // tl
    return pl.pallas_call(
        _bn_apply_kernel,
        out_shape=jax.ShapeDtypeStruct((N, C, Lp), x.dtype),
        grid=(N, n_l),
        in_specs=[pl.BlockSpec((1, C, tl), lambda n, l: (n, 0, l)),
                  pl.BlockSpec((C, 2), lambda n, l: (0, 0))],
        out_specs=pl.BlockSpec((1, C, tl), lambda n, l: (n, 0, l)),
        compiler_params=pltpu.CompilerParams(
            dimension_semantics=("parallel", "parallel"),
            vmem_limit_bytes=_VMEM_LIMIT_BYTES),
    )(x, scale_shift)


# ----------------------------------------------------------------------------
# MultiKerv2d forward
# ----------------------------------------------------------------------------
class MultiKerv2d:
    def __init__(self, in_channels, out_channels, kernel_size, stride=1,
                 padding=0, dilation=1, groups=1, bias=True,
                 mapping=('translation',), kernel_type=('linear',),
                 learnable_kernel=(False,), kernel_regularizer=(False,),
                 alpha=0.03, balance=2, power=3, sigma=2, gamma=1,
                 kernel_out_channels=(-1,), key=None,
                 compute_dtype=jnp.bfloat16, max_lane_tile=1024, eps=1e-5):
        assert out_channels == sum(kernel_out_channels)
        assert len(mapping) == len(kernel_type) == len(kernel_out_channels)
        assert len(mapping) == len(learnable_kernel) == len(kernel_regularizer)
        assert groups == 1  # TODO(synk): grouped kervolution not implemented
        # Keep power an int so (x + b)**p lowers to integer_pow (no NaNs for
        # negative bases).
        assert isinstance(power, int) and power >= 1
        # TODO(synk): only mapping='translation' (standard unfold) supported;
        # learnable_kernel / kernel_regularizer only affect training, not fwd.
        self.in_channels = in_channels
        self.out_channels = out_channels
        self.kh = self.kw = kernel_size
        self.stride, self.padding, self.dilation = stride, padding, dilation
        self.kernel_type = list(kernel_type)
        self.balance = float(balance)
        self.power = power
        self.gamma = float(gamma)
        self.kernel_out_channels = list(kernel_out_channels)
        self.compute_dtype = compute_dtype
        self.max_lane_tile = max_lane_tile
        self.eps = float(eps)

        key = jax.random.PRNGKey(0) if key is None else key
        self.weights, self.biases = [], []
        for ch in kernel_out_channels:
            assert ch > 0
            key, kw_, kb_ = jax.random.split(key, 3)
            w = 0.1 * jax.random.normal(
                kw_, (ch, in_channels * self.kh * self.kw), dtype=jnp.float32)
            b = (0.1 * jax.random.normal(kb_, (ch, 1), dtype=jnp.float32)
                 if bias else jnp.zeros((ch, 1), jnp.float32))
            self.weights.append(w)
            self.biases.append(b)

        # Fused parameters: one concatenated weight / bias + static slices.
        self.weight_cat = jnp.concatenate(self.weights, axis=0)   # (C_total, K)
        self.bias_cat = jnp.concatenate(self.biases, axis=0)      # (C_total, 1)
        offs = np.cumsum([0] + self.kernel_out_channels)
        self.branch_specs = tuple(
            (int(offs[i]), int(offs[i + 1]), self.kernel_type[i])
            for i in range(len(self.kernel_out_channels)))

    def __call__(self, x):
        N = x.shape[0]
        patches, out_h, out_w = im2col(x, self.kh, self.kw, self.stride,
                                       self.padding, self.dilation)
        K = patches.shape[1]
        L = out_h * out_w
        C = self.out_channels

        patch_bytes = jnp.dtype(self.compute_dtype).itemsize
        tl, _, Lp = _choose_l_tiling(L, K, C, patch_bytes,
                                     cap_lanes=self.max_lane_tile)
        if Lp > L:  # lane-dense padding (unmasked stores); masked out of stats
            patches = jnp.pad(patches, ((0, 0), (0, 0), (0, Lp - L)))
        patches = patches.astype(self.compute_dtype)   # halves the HBM stream

        w = self.weight_cat.astype(self.compute_dtype)
        # ||w||^2 hoisted to trace time (constant), consistent with what the
        # MXU dot actually sees.  Bias kept separate from the matmul because
        # the gaussian branch needs the raw dot.
        w_sq = jnp.sum(jnp.square(w.astype(jnp.float32)), axis=1, keepdims=True)
        aux = jnp.concatenate([self.bias_cat, w_sq], axis=1)       # (C, 2)

        out, stats = fused_kerv_bn_stats(
            patches, w, aux, branch_specs=self.branch_specs,
            balance=self.balance, power=self.power, gamma=self.gamma,
            tl=tl, l_valid=L)

        # Fold the tiny per-tile partials into per-channel batch statistics
        # (training-mode BatchNorm2d, gamma=1 beta=0).
        count = float(N * L)
        s = jnp.sum(stats[..., 0], axis=(0, 1))                    # (C,)
        ss = jnp.sum(stats[..., 1], axis=(0, 1))                   # (C,)
        mean = s / count
        var = jnp.maximum(ss / count - jnp.square(mean), 0.0)      # clamp >= 0
        scale = jax.lax.rsqrt(var + self.eps)
        shift = -mean * scale
        scale_shift = jnp.stack([scale, shift], axis=1)            # (C, 2)

        out = bn_apply(out, scale_shift, tl=tl)                    # (N, C, Lp)
        out = out[:, :, :L].reshape(N, C, out_h, out_w)
        return out


# ----------------------------------------------------------------------------
# Pure-JAX reference (mirrors the compute-dtype cast of the matmul operands)
# ----------------------------------------------------------------------------
def reference_forward(model, x):
    N = x.shape[0]
    patches, out_h, out_w = im2col(x, model.kh, model.kw, model.stride,
                                   model.padding, model.dilation)
    p = patches.astype(model.compute_dtype).astype(jnp.float32)
    outs = []
    for i, ch in enumerate(model.kernel_out_channels):
        w = model.weights[i].astype(model.compute_dtype).astype(jnp.float32)
        b = model.biases[i]
        dot = jnp.einsum('ck,nkl->ncl', w, p)
        kt = model.kernel_type[i]
        if kt == 'linear':
            o = dot
        elif kt == 'polynomial':
            o = (dot + model.balance) ** model.power
        elif kt == 'gaussian':
            diff = p[:, None, :, :] - w[None, :, :, None]
            o = jnp.exp(-model.gamma * jnp.sum(diff * diff, axis=2))
        else:
            raise NotImplementedError(kt)
        o = o + b[None]
        mean = jnp.mean(o, axis=(0, 2), keepdims=True)
        var = jnp.mean(jnp.square(o - mean), axis=(0, 2), keepdims=True)
        o = (o - mean) * jax.lax.rsqrt(var + 1e-5)
        outs.append(o.reshape(N, ch, out_h, out_w))
    return jnp.concatenate(outs, axis=1)


if __name__ == "__main__":
    key = jax.random.PRNGKey(0)
    kx1, kx2, kp1, kp2 = jax.random.split(key, 4)
    N, C_in = 2, 4

    # Config 1: bf16 matmul path, lane-aligned L (16*16 = 256); max_lane_tile
    # forced to 128 so the L-tiling + per-tile stats aggregation is exercised
    # (real shapes keep the default 1024-lane cap).
    H, W = 16, 16
    x1 = jax.random.normal(kx1, (N, C_in, H, W), dtype=jnp.float32)
    model1 = MultiKerv2d(
        in_channels=C_in, out_channels=8, kernel_size=3, stride=1, padding=1,
        bias=True,
        mapping=['translation', 'translation', 'translation'],
        kernel_type=['linear', 'polynomial', 'gaussian'],
        learnable_kernel=[False, False, False],
        kernel_regularizer=[False, False, False],
        balance=2, power=3, gamma=1,
        kernel_out_channels=[4, 2, 2],
        key=kp1, compute_dtype=jnp.bfloat16, max_lane_tile=128)
    out1 = jax.block_until_ready(model1(x1))
    ref1 = jax.block_until_ready(reference_forward(model1, x1))
    np.testing.assert_allclose(np.asarray(out1), np.asarray(ref1),
                               rtol=1e-3, atol=1e-3)
    assert out1.shape == (N, 8, H, W)

    # Config 2: f32 path, non-128-aligned L (8*8 = 64 -> padded + masked lanes).
    H2 = W2 = 10
    x2 = jax.random.normal(kx2, (N, C_in, H2, W2), dtype=jnp.float32)
    model2 = MultiKerv2d(
        in_channels=C_in, out_channels=8, kernel_size=3, stride=1, padding=0,
        bias=True,
        mapping=['translation', 'translation', 'translation'],
        kernel_type=['linear', 'polynomial', 'gaussian'],
        learnable_kernel=[False, False, False],
        kernel_regularizer=[False, False, False],
        balance=2, power=3, gamma=0.05,
        kernel_out_channels=[4, 2, 2],
        key=kp2, compute_dtype=jnp.float32)
    out2 = jax.block_until_ready(model2(x2))
    ref2 = jax.block_until_ready(reference_forward(model2, x2))
    np.testing.assert_allclose(np.asarray(out2), np.asarray(ref2),
                               rtol=5e-4, atol=5e-4)
    assert out2.shape == (N, 8, H2 - 2, W2 - 2)

    print("KERNEL_OK")
</pallas_src>

<mosaic_0001>
module attributes {stable_mosaic.version = 11 : i64} {
  func.func @_fused_kerv_kernel(%arg0: i32, %arg1: i32, %arg2: memref<1x36x128xbf16, #tpu.memory_space<vmem>>, %arg3: memref<8x36xbf16, #tpu.memory_space<vmem>>, %arg4: memref<8x2xf32, #tpu.memory_space<vmem>>, %arg5: memref<1x8x128xf32, #tpu.memory_space<vmem>>, %arg6: memref<1x1x8x2xf32, #tpu.memory_space<vmem>>) attributes {dimension_semantics = [#tpu.dimension_semantics<parallel>, #tpu.dimension_semantics<parallel>], iteration_bounds = array<i64: 2, 2>, scalar_prefetch = 0 : i64, scratch_operands = 0 : i64, tpu.core_type = #tpu.core_type<tc>, window_params = [{transform_indices = @transform_0, window_bounds = array<i64: 1, 36, 128>}, {pipeline_mode = #tpu.pipeline_mode<synchronous>, transform_indices = @transform_1, window_bounds = array<i64: 8, 36>}, {pipeline_mode = #tpu.pipeline_mode<synchronous>, transform_indices = @transform_2, window_bounds = array<i64: 8, 2>}, {transform_indices = @transform_3, window_bounds = array<i64: 1, 8, 128>}, {transform_indices = @transform_4, window_bounds = array<i64: 1, 1, 8, 2>}]} {
    %c0 = arith.constant 0 : index
    %c0_0 = arith.constant 0 : index
    %c0_1 = arith.constant 0 : index
    %0 = vector.load %arg2[%c0, %c0_0, %c0_1] : memref<1x36x128xbf16, #tpu.memory_space<vmem>>, vector<1x36x128xbf16>
    %1 = vector.shape_cast %0 : vector<1x36x128xbf16> to vector<36x128xbf16>
    %c0_2 = arith.constant 0 : index
    %c0_3 = arith.constant 0 : index
    %2 = vector.load %arg3[%c0_2, %c0_3] : memref<8x36xbf16, #tpu.memory_space<vmem>>, vector<8x36xbf16>
    %cst = arith.constant dense<0.000000e+00> : vector<8x128xf32>
    %3 = tpu.matmul %2, %1, %cst {dimension_numbers = #tpu.dot_dimension_numbers<[1], [0], [0], [1], [0, 0, 1, 1], [], []>} : vector<8x36xbf16>, vector<36x128xbf16>, vector<8x128xf32> -> vector<8x128xf32>
    %c0_4 = arith.constant 0 : index
    %c0_5 = arith.constant 0 : index
    %4 = vector.load %arg4[%c0_4, %c0_5] : memref<8x2xf32, #tpu.memory_space<vmem>>, vector<8x1xf32>
    %c0_6 = arith.constant 0 : index
    %c1 = arith.constant 1 : index
    %5 = vector.load %arg4[%c0_6, %c1] : memref<8x2xf32, #tpu.memory_space<vmem>>, vector<8x1xf32>
    %6 = arith.extf %1 : vector<36x128xbf16> to vector<36x128xf32>
    %7 = arith.mulf %6, %6 : vector<36x128xf32>
    %cst_7 = arith.constant dense<0.000000e+00> : vector<128xf32>
    %8 = vector.multi_reduction <add>, %7, %cst_7 [0] : vector<36x128xf32> to vector<128xf32>
    %9 = vector.shape_cast %8 : vector<128xf32> to vector<1x128xf32>
    %10 = vector.extract_strided_slice %3 {offsets = [0, 0], sizes = [4, 128], strides = [1, 1]} : vector<8x128xf32> to vector<4x128xf32>
    %11 = vector.extract_strided_slice %3 {offsets = [4, 0], sizes = [2, 128], strides = [1, 1]} : vector<8x128xf32> to vector<2x128xf32>
    %cst_8 = arith.constant 2.000000e+00 : f32
    %12 = vector.broadcast %cst_8 : f32 to vector<2x128xf32>
    %13 = arith.addf %11, %12 : vector<2x128xf32>
    %14 = arith.mulf %13, %13 : vector<2x128xf32>
    %15 = arith.mulf %13, %14 : vector<2x128xf32>
    %16 = vector.extract_strided_slice %3 {offsets = [6, 0], sizes = [2, 128], strides = [1, 1]} : vector<8x128xf32> to vector<2x128xf32>
    %17 = vector.extract_strided_slice %5 {offsets = [6, 0], sizes = [2, 1], strides = [1, 1]} : vector<8x1xf32> to vector<2x1xf32>
    %18 = vector.broadcast %9 : vector<1x128xf32> to vector<2x128xf32>
    %19 = vector.broadcast %17 : vector<2x1xf32> to vector<2x128xf32>
    %20 = arith.addf %18, %19 : vector<2x128xf32>
    %cst_9 = arith.constant 2.000000e+00 : f32
    %21 = vector.broadcast %cst_9 : f32 to vector<2x128xf32>
    %22 = arith.mulf %21, %16 : vector<2x128xf32>
    %23 = arith.subf %20, %22 : vector<2x128xf32>
    %cst_10 = arith.constant 0.000000e+00 : f32
    %24 = vector.broadcast %cst_10 : f32 to vector<2x128xf32>
    %25 = arith.maximumf %23, %24 : vector<2x128xf32>
    %cst_11 = arith.constant -1.000000e+00 : f32
    %26 = vector.broadcast %cst_11 : f32 to vector<2x128xf32>
    %27 = arith.mulf %26, %25 : vector<2x128xf32>
    %28 = math.exp %27 : vector<2x128xf32>
    %29 = tpu.concatenate %10, %15, %28 in 0 : vector<4x128xf32>, vector<2x128xf32>, vector<2x128xf32> -> vector<8x128xf32>
    %30 = vector.broadcast %4 : vector<8x1xf32> to vector<8x128xf32>
    %31 = arith.addf %29, %30 : vector<8x128xf32>
    %c0_12 = arith.constant 0 : index
    %c0_13 = arith.constant 0 : index
    %c0_14 = arith.constant 0 : index
    %32 = vector.load %arg5[%c0_12, %c0_13, %c0_14] : memref<1x8x128xf32, #tpu.memory_space<vmem>>, vector<1x8x128xf32>
    %33 = vector.shape_cast %32 : vector<1x8x128xf32> to vector<8x128xf32>
    %34 = vector.shape_cast %31 : vector<8x128xf32> to vector<1x8x128xf32>
    tpu.vector_store %arg5[%c0_12, %c0_13, %c0_14], %34 {strides = array<i32>} : memref<1x8x128xf32, #tpu.memory_space<vmem>>, vector<1x8x128xf32>,
    %35 = tpu.iota {dimensions = array<i32: 1>} : vector<1x128xi32>
    %c128_i32 = arith.constant 128 : i32
    %36 = arith.muli %arg1, %c128_i32 : i32
    %37 = vector.broadcast %36 : i32 to vector<1x128xi32>
    %38 = arith.addi %35, %37 : vector<1x128xi32>
    %c256_i32 = arith.constant 256 : i32
    %39 = vector.broadcast %c256_i32 : i32 to vector<1x128xi32>
    %40 = arith.cmpi slt, %38, %39 : vector<1x128xi32>
    %41 = arith.extui %40 : vector<1x128xi1> to vector<1x128xi32>
    %42 = arith.sitofp %41 : vector<1x128xi32> to vector<1x128xf32>
    %43 = vector.broadcast %42 : vector<1x128xf32> to vector<8x128xf32>
    %44 = arith.mulf %31, %43 : vector<8x128xf32>
    %cst_15 = arith.constant dense<0.000000e+00> : vector<8xf32>
    %45 = vector.multi_reduction <add>, %44, %cst_15 [1] : vector<8x128xf32> to vector<8xf32>
    %46 = vector.shape_cast %45 : vector<8xf32> to vector<8x1xf32>
    %47 = arith.mulf %44, %44 : vector<8x128xf32>
    %cst_16 = arith.constant dense<0.000000e+00> : vector<8xf32>
    %48 = vector.multi_reduction <add>, %47, %cst_16 [1] : vector<8x128xf32> to vector<8xf32>
    %49 = vector.shape_cast %48 : vector<8xf32> to vector<8x1xf32>
    %50 = tpu.concatenate %46, %49 in 1 : vector<8x1xf32>, vector<8x1xf32> -> vector<8x2xf32>
    %c0_17 = arith.constant 0 : index
    %c0_18 = arith.constant 0 : index
    %c0_19 = arith.constant 0 : index
    %c0_20 = arith.constant 0 : index
    %51 = vector.load %arg6[%c0_17, %c0_18, %c0_19, %c0_20] : memref<1x1x8x2xf32, #tpu.memory_space<vmem>>, vector<1x1x8x2xf32>
    %52 = vector.shape_cast %51 : vector<1x1x8x2xf32> to vector<8x2xf32>
    %53 = vector.shape_cast %50 : vector<8x2xf32> to vector<1x1x8x2xf32>
    tpu.vector_store %arg6[%c0_17, %c0_18, %c0_19, %c0_20], %53 {strides = array<i32>} : memref<1x1x8x2xf32, #tpu.memory_space<vmem>>, vector<1x1x8x2xf32>,
    return
  }
  func.func @transform_0(%arg0: i32, %arg1: i32) -> (i32, i32, i32) {
    %c0_i32 = arith.constant 0 : i32
    %c0_i32_0 = arith.constant 0 : i32
    return %arg0, %c0_i32, %arg1 : i32, i32, i32
  }
  func.func @transform_1(%arg0: i32, %arg1: i32) -> (i32, i32) {
    %c0_i32 = arith.constant 0 : i32
    %c0_i32_0 = arith.constant 0 : i32
    %c0_i32_1 = arith.constant 0 : i32
    return %c0_i32, %c0_i32_0 : i32, i32
  }
  func.func @transform_2(%arg0: i32, %arg1: i32) -> (i32, i32) {
    %c0_i32 = arith.constant 0 : i32
    %c0_i32_0 = arith.constant 0 : i32
    %c0_i32_1 = arith.constant 0 : i32
    return %c0_i32, %c0_i32_0 : i32, i32
  }
  func.func @transform_3(%arg0: i32, %arg1: i32) -> (i32, i32, i32) {
    %c0_i32 = arith.constant 0 : i32
    %c0_i32_0 = arith.constant 0 : i32
    return %arg0, %c0_i32, %arg1 : i32, i32, i32
  }
  func.func @transform_4(%arg0: i32, %arg1: i32) -> (i32, i32, i32, i32) {
    %c0_i32 = arith.constant 0 : i32
    %c0_i32_0 = arith.constant 0 : i32
    %c0_i32_1 = arith.constant 0 : i32
    return %arg0, %arg1, %c0_i32, %c0_i32_0 : i32, i32, i32, i32
  }
}

</mosaic_0001>

<llo_original>
// kernel: tpu_custom_call.1
$region0: #{tpu_custom_call.1}
  #allocation0 [shape = 'u32[]', space=smem, size = 0x4, offset = 0x4, fixed_abs, tag = 'smem constant byte address 0x4 - core index']
  #allocation1 [shape = 'u32[72,128]{1,0:T(1,128)}', space=vmem, size = 0x9000, scoped, tag = 'internal scratch']
  %s0 = inlined_call_operand.vmem [shape: bf16[2,36,256], index: 0, kind: input, shape index: {}]
  %s1 = inlined_call_operand.vmem [shape: bf16[8,36], index: 1, kind: input, shape index: {}]
  %s2 = inlined_call_operand.vmem [shape: f32[8,2], index: 2, kind: input, shape index: {}]
  %s3 = inlined_call_operand.hbm [shape: f32[2,8,256], index: 3, kind: output, shape index: {0}]
  %s4 = inlined_call_operand.vmem [shape: f32[2,2,8,2], index: 4, kind: output, shape index: {1}]
  %5 = xla_tuple %s3, %s4
  %s6 = sld [smem:[#allocation0]]
  $region94: #{tpu_custom_call.1} parent=0
    _
  %s8 = ssub.s32 1, %s6
  %s9 = scalar_select 0, %s8, %s6
  $region1: #{tpu_custom_call.1} parent=0
    #allocation2 [shape = 'u8[20480]{0}', space=vmem, size = 0x5000, scoped, tag = 'input window, operand 0']
    #allocation3 [shape = 'u8[8192]{0}', space=vmem, size = 0x2000, scoped, tag = 'output window, operand 0']
    #allocation4 [shape = 's32[2]{0}', space=sflag, size = 0x8, scoped, tag = 'scoped memory for tpu_custom_call.1']
    %10 = vsyncpa [#allocation4], 0
    %s11 = scalar_lea.sflag [#allocation4], 1
    %12 = vsyncpa %s11, 0
    loop: start=0, step=1, limit=6
    $region2: #{tpu_custom_call.1} parent=1 // loop_pre_header
      _
    $region3: #{tpu_custom_call.1} parent=1 // loop_header
      %s14 = sphi 0, %s18
      %p15 = scmp.ge.s32.totalorder %s14, 6
      %s21 = sphi 0, %s33
      %s22 = sphi 0, %s29
      %s23 = sphi 0, %s21
      %s24 = sphi 0, %s22
      %s25 = sphi 0, %s23
      %s26 = sphi 0, %s24
      %s38 = sphi 0, %s40
      %s41 = sphi 0, %s38
      %s42 = sphi 0, %s41
      %s58 = sphi 0, %s42
      %s62 = sphi 0, %s62
      %s64 = sphi 0, %s62
      %s65 = sphi 0, %s64
      %s79 = sphi 0, %s65
      %s83 = sphi 0, %s83
      %s85 = sphi 0, %s83
      %s86 = sphi 0, %s85
      %s100 = sphi 0, %s86
      %s108 = sphi 0, %s110
      %s111 = sphi 0, %s108
      %s112 = sphi 0, %s111
      %s128 = sphi 0, %s112
      %s136 = sphi 0, %s138
      %s139 = sphi 0, %s136
      %s140 = sphi 0, %s139
      %s156 = sphi 0, %s140
    $region4: #{tpu_custom_call.1} parent=1 // loop_header_branch
      %17 = sbr.rel (%p15) target = $region8
    $region5: #{tpu_custom_call.1} parent=1 // loop_body
      %s19 = ssub.s32 %s14, 1
      %s20 = ssub.s32 %s14, 2
      %s27 = sadd.s32 1, %s22
      %p28 = scmp.ge.s32.totalorder %s27, 2
      %s29 = scalar_select %p28, 0, %s27
      %s30 = sadd.s32 1, %s21
      %s31 = scalar_select %p28, %s30, %s21
      %p32 = scmp.ge.s32.totalorder %s31, 2
      %s33 = scalar_select %p32, 0, %s31
      %s34 = ssub.s32 %s21, %s33
      %s35 = ssub.s32 %s22, %s29
      %s36 = sor.u32 %s34, %s35
      %p37 = scmp.eq.s32.totalorder %s36, 0
      %s39 = sadd.s32 %s38, 1
      %s40 = scalar_select %p37, %s38, %s39
      %p43 = pneg %p37
      %p44 = scmp.eq.s32.totalorder %s14, 3
      %p45 = por %p43, %p44
      %p46 = scmp.ne.s32.totalorder %s38, %s41
      %p47 = scmp.eq.s32.totalorder %s14, 0
      %p48 = por %p46, %p47
      %p49 = scmp.ne.s32.totalorder %s38, %s41
      %p50 = scmp.eq.s32.totalorder %s19, 3
      %p51 = por %p49, %p50
      %p52 = scmp.ne.s32.totalorder %s41, %s42
      %p53 = scmp.eq.s32.totalorder %s19, 0
      %p54 = por %p52, %p53
      %p55 = scmp.ne.s32.totalorder %s41, %s42
      %p56 = scmp.eq.s32.totalorder %s20, 3
      %p57 = por %p55, %p56
      %p59 = scmp.ne.s32.totalorder %s42, %s58
      %p60 = scmp.eq.s32.totalorder %s20, 0
      %p61 = por %p59, %p60
      %s63 = sadd.s32 %s62, 1
      %p66 = scmp.eq.s32.totalorder %s14, 3
      %p67 = scmp.ne.s32.totalorder %s62, %s64
      %p68 = scmp.eq.s32.totalorder %s14, 0
      %p69 = por %p67, %p68
      %p70 = scmp.ne.s32.totalorder %s62, %s64
      %p71 = scmp.eq.s32.totalorder %s19, 3
      %p72 = por %p70, %p71
      %p73 = scmp.ne.s32.totalorder %s64, %s65
      %p74 = scmp.eq.s32.totalorder %s19, 0
      %p75 = por %p73, %p74
      %p76 = scmp.ne.s32.totalorder %s64, %s65
      %p77 = scmp.eq.s32.totalorder %s20, 3
      %p78 = por %p76, %p77
      %p80 = scmp.ne.s32.totalorder %s65, %s79
      %p81 = scmp.eq.s32.totalorder %s20, 0
      %p82 = por %p80, %p81
      %s84 = sadd.s32 %s83, 1
      %p87 = scmp.eq.s32.totalorder %s14, 3
      %p88 = scmp.ne.s32.totalorder %s83, %s85
      %p89 = scmp.eq.s32.totalorder %s14, 0
      %p90 = por %p88, %p89
      %p91 = scmp.ne.s32.totalorder %s83, %s85
      %p92 = scmp.eq.s32.totalorder %s19, 3
      %p93 = por %p91, %p92
      %p94 = scmp.ne.s32.totalorder %s85, %s86
      %p95 = scmp.eq.s32.totalorder %s19, 0
      %p96 = por %p94, %p95
      %p97 = scmp.ne.s32.totalorder %s85, %s86
      %p98 = scmp.eq.s32.totalorder %s20, 3
      %p99 = por %p97, %p98
      %p101 = scmp.ne.s32.totalorder %s86, %s100
      %p102 = scmp.eq.s32.totalorder %s20, 0
      %p103 = por %p101, %p102
      %s104 = ssub.s32 %s21, %s33
      %s105 = ssub.s32 %s22, %s29
      %s106 = sor.u32 %s104, %s105
      %p107 = scmp.eq.s32.totalorder %s106, 0
      %s109 = sadd.s32 %s108, 1
      %s110 = scalar_select %p107, %s108, %s109
      %p113 = pneg %p107
      %p114 = scmp.eq.s32.totalorder %s14, 3
      %p115 = por %p113, %p114
      %p116 = scmp.ne.s32.totalorder %s108, %s111
      %p117 = scmp.eq.s32.totalorder %s14, 0
      %p118 = por %p116, %p117
      %p119 = scmp.ne.s32.totalorder %s108, %s111
      %p120 = scmp.eq.s32.totalorder %s19, 3
      %p121 = por %p119, %p120
      %p122 = scmp.ne.s32.totalorder %s111, %s112
      %p123 = scmp.eq.s32.totalorder %s19, 0
      %p124 = por %p122, %p123
      %p125 = scmp.ne.s32.totalorder %s111, %s112
      %p126 = scmp.eq.s32.totalorder %s20, 3
      %p127 = por %p125, %p126
      %p129 = scmp.ne.s32.totalorder %s112, %s128
      %p130 = scmp.eq.s32.totalorder %s20, 0
      %p131 = por %p129, %p130
      %s132 = ssub.s32 %s21, %s33
      %s133 = ssub.s32 %s22, %s29
      %s134 = sor.u32 %s132, %s133
      %p135 = scmp.eq.s32.totalorder %s134, 0
      %s137 = sadd.s32 %s136, 1
      %s138 = scalar_select %p135, %s136, %s137
      %p141 = pneg %p135
      %p142 = scmp.eq.s32.totalorder %s14, 3
      %p143 = por %p141, %p142
      %p144 = scmp.ne.s32.totalorder %s136, %s139
      %p145 = scmp.eq.s32.totalorder %s14, 0
      %p146 = por %p144, %p145
      %p147 = scmp.ne.s32.totalorder %s136, %s139
      %p148 = scmp.eq.s32.totalorder %s19, 3
      %p149 = por %p147, %p148
      %p150 = scmp.ne.s32.totalorder %s139, %s140
      %p151 = scmp.eq.s32.totalorder %s19, 0
      %p152 = por %p150, %p151
      %p153 = scmp.ne.s32.totalorder %s139, %s140
      %p154 = scmp.eq.s32.totalorder %s20, 3
      %p155 = por %p153, %p154
      %p157 = scmp.ne.s32.totalorder %s140, %s156
      %p158 = scmp.eq.s32.totalorder %s20, 0
      %p159 = por %p157, %p158
      %p160 = scmp.le.s32.totalorder 1, %s14
      %p161 = scmp.lt.s32.totalorder %s14, 5
      %p162 = pnand %p160, %p161
      %p163 = pneg %p162
      // Predicated region
      $region9: #{tpu_custom_call.1} parent=5 // pred_check
        _
      $region10: #{tpu_custom_call.1} parent=5 // pred_check_branch
        %165 = sbr.rel (%p162) target = $region12
      $region11: #{tpu_custom_call.1} parent=5 // pred_region
        %s166 = ssub.s32 %s14, 1
        // Predicated region
        $region13: #{tpu_custom_call.1} parent=11 // pred_check
          %p167 = pneg %p75
        $region14: #{tpu_custom_call.1} parent=11 // pred_check_branch
          %169 = sbr.rel (%p167) target = $region16
        $region15: #{tpu_custom_call.1} parent=11 // pred_region
          _
        $region16: #{tpu_custom_call.1} parent=11 // pred_fallthru
          _
        // Predicated region
        $region17: #{tpu_custom_call.1} parent=11 // pred_check
          %p170 = pneg %p96
        $region18: #{tpu_custom_call.1} parent=11 // pred_check_branch
          %172 = sbr.rel (%p170) target = $region20
        $region19: #{tpu_custom_call.1} parent=11 // pred_region
          _
        $region20: #{tpu_custom_call.1} parent=11 // pred_fallthru
          _
      $region12: #{tpu_custom_call.1} parent=5 // pred_fallthru
        _
      %p173 = scmp.lt.s32.totalorder %s14, 4
      // Predicated region
      $region21: #{tpu_custom_call.1} parent=5 // pred_check
        %p174 = pneg %p173
      $region22: #{tpu_custom_call.1} parent=5 // pred_check_branch
        %176 = sbr.rel (%p174) target = $region24
      $region23: #{tpu_custom_call.1} parent=5 // pred_region
        // Predicated region
        $region25: #{tpu_custom_call.1} parent=23 // pred_check
          %p177 = pneg %p48
        $region26: #{tpu_custom_call.1} parent=23 // pred_check_branch
          %179 = sbr.rel (%p177) target = $region28
        $region27: #{tpu_custom_call.1} parent=23 // pred_region
          %s180 = sand.u32 %s38, 1
          %s181 = sand.u32 %s38, 1
          %s182 = smul.addr %s181, 20
          %s183 = scalar_lea.vmem [#allocation2], %s182
          %s184 = smul.addr %s21, 10
          %s185 = sadd.s32 %s22, %s184
          %s186 = smul.addr %s185, 4
          %s187 = scalar_lea.vmem %s0, %s186
          // Predicated region
          $region29: #{tpu_custom_call.1} parent=27 // pred_check
            _
          $region30: #{tpu_custom_call.1} parent=27 // pred_check_branch
            %189 = sbr.rel (0) target = $region32
          $region31: #{tpu_custom_call.1} parent=27 // pred_region
            // Predicated region
            $region33: #{tpu_custom_call.1} parent=31 // pred_check
              _
            $region34: #{tpu_custom_call.1} parent=31 // pred_check_branch
              %191 = sbr.rel target = $region36
            $region35: #{tpu_custom_call.1} parent=31 // pred_region
              // Predicated region
              $region48: #{tpu_custom_call.1} parent=35 // pred_check
                _
              $region49: #{tpu_custom_call.1} parent=35 // pred_check_branch
                %215 = sbr.rel (0) target = $region51
              $region50: #{tpu_custom_call.1} parent=35 // pred_region
                loop: start=0, step=1, limit=1
                $region52: #{tpu_custom_call.1} parent=50 // loop_pre_header
                  _
                $region53: #{tpu_custom_call.1} parent=50 // loop_header
                  %s217 = sphi 0, %s221
                  %p218 = scmp.ge.s32.totalorder %s217, 1
                  %s222 = sphi %s187, %s187
                  %s223 = sphi %s183, %s183
                $region54: #{tpu_custom_call.1} parent=50 // loop_header_branch
                  %220 = sbr.rel (%p218) target = $region58
                $region55: #{tpu_custom_call.1} parent=50 // loop_body
                  _
                $region56: #{tpu_custom_call.1} parent=50 // loop_footer
                  %s221 = sadd.s32 1, %s217
                $region57: #{tpu_custom_call.1} parent=50 // loop_footer_branch
                  %216 = sbr.rel target = $region53
                $region58: #{tpu_custom_call.1} parent=50 // loop_exit
                  _
                %s225 = ssub.s32 16, 1
                loop: start=0, step=1, limit=1
                $region59: #{tpu_custom_call.1} parent=50 // loop_pre_header
                  _
                $region60: #{tpu_custom_call.1} parent=50 // loop_header
                  %s227 = sphi 0, %s231
                  %p228 = scmp.ge.s32.totalorder %s227, 1
                  %s232 = sphi %s187, %s187
                  %s233 = sphi %s183, %s183
                $region61: #{tpu_custom_call.1} parent=50 // loop_header_branch
                  %230 = sbr.rel (%p228) target = $region65
                $region62: #{tpu_custom_call.1} parent=50 // loop_body
                  %v234 = vld [vmem:[%s232] sm:%s225]
                  %235 = vst [vmem:[%s233] sm:%s225] %v234
                  %v236 = vld [vmem:[%s232 + $0x8] sm:%s225]
                  %237 = vst [vmem:[%s233 + $0x4] sm:%s225] %v236
                  %v238 = vld [vmem:[%s232 + $0x10] sm:%s225]
                  %239 = vst [vmem:[%s233 + $0x8] sm:%s225] %v238
                  %v240 = vld [vmem:[%s232 + $0x18] sm:%s225]
                  %241 = vst [vmem:[%s233 + $0xc] sm:%s225] %v240
                  %v242 = vld [vmem:[%s232 + $0x20] sm:%s225]
                  %243 = vst [vmem:[%s233 + $0x10] sm:%s225] %v242
                $region63: #{tpu_custom_call.1} parent=50 // loop_footer
                  %s231 = sadd.s32 1, %s227
                $region64: #{tpu_custom_call.1} parent=50 // loop_footer_branch
                  %226 = sbr.rel target = $region60
                $region65: #{tpu_custom_call.1} parent=50 // loop_exit
                  _
              $region51: #{tpu_custom_call.1} parent=35 // pred_fallthru
                _
            $region36: #{tpu_custom_call.1} parent=31 // pred_fallthru
              _
            // Predicated region
            $region37: #{tpu_custom_call.1} parent=31 // pred_check
              _
            $region38: #{tpu_custom_call.1} parent=31 // pred_check_branch
              %193 = sbr.rel (0) target = $region40
            $region39: #{tpu_custom_call.1} parent=31 // pred_region
              %s195 = ssub.s32 16, 1
              loop: start=0, step=1, limit=1
              $region41: #{tpu_custom_call.1} parent=39 // loop_pre_header
                _
              $region42: #{tpu_custom_call.1} parent=39 // loop_header
                %s197 = sphi 0, %s201
                %p198 = scmp.ge.s32.totalorder %s197, 1
                %s202 = sphi %s187, %s187
                %s203 = sphi %s183, %s183
              $region43: #{tpu_custom_call.1} parent=39 // loop_header_branch
                %200 = sbr.rel (%p198) target = $region47
              $region44: #{tpu_custom_call.1} parent=39 // loop_body
                %v204 = vld [vmem:[%s202] sm:%s195]
                %205 = vst [vmem:[%s203] sm:%s195] %v204
                %v206 = vld [vmem:[%s202 + $0x8] sm:%s195]
                %207 = vst [vmem:[%s203 + $0x4] sm:%s195] %v206
                %v208 = vld [vmem:[%s202 + $0x10] sm:%s195]
                %209 = vst [vmem:[%s203 + $0x8] sm:%s195] %v208
                %v210 = vld [vmem:[%s202 + $0x18] sm:%s195]
                %211 = vst [vmem:[%s203 + $0xc] sm:%s195] %v210
                %v212 = vld [vmem:[%s202 + $0x20] sm:%s195]
                %213 = vst [vmem:[%s203 + $0x10] sm:%s195] %v212
              $region45: #{tpu_custom_call.1} parent=39 // loop_footer
                %s201 = sadd.s32 1, %s197
              $region46: #{tpu_custom_call.1} parent=39 // loop_footer_branch
                %196 = sbr.rel target = $region42
              $region47: #{tpu_custom_call.1} parent=39 // loop_exit
                _
            $region40: #{tpu_custom_call.1} parent=31 // pred_fallthru
              _
          $region32: #{tpu_custom_call.1} parent=27 // pred_fallthru
            _
          %244 = vnop
        $region28: #{tpu_custom_call.1} parent=23 // pred_fallthru
          _
      $region24: #{tpu_custom_call.1} parent=5 // pred_fallthru
        _
      %p245 = scmp.le.s32.totalorder 1, %s14
      %p246 = scmp.lt.s32.totalorder %s14, 5
      %p247 = pnand %p245, %p246
      %p248 = pneg %p247
      // Predicated region
      $region66: #{tpu_custom_call.1} parent=5 // pred_check
        _
      $region67: #{tpu_custom_call.1} parent=5 // pred_check_branch
        %250 = sbr.rel (%p247) target = $region69
      $region68: #{tpu_custom_call.1} parent=5 // pred_region
        %s251 = ssub.s32 %s14, 1
        %s252 = sand.u32 %s41, 1
        %s253 = sand.u32 %s41, 1
        %s254 = smul.addr %s253, 20
        %s255 = scalar_lea.vmem [#allocation2], %s254
        // Predicated region
        $region70: #{tpu_custom_call.1} parent=68 // pred_check
          %p256 = pneg %p54
        $region71: #{tpu_custom_call.1} parent=68 // pred_check_branch
          %258 = sbr.rel (%p256) target = $region73
        $region72: #{tpu_custom_call.1} parent=68 // pred_region
          _
        $region73: #{tpu_custom_call.1} parent=68 // pred_fallthru
          _
        %s259 = sand.u32 %s41, 1
        %s260 = sand.u32 %s41, 1
        %s261 = smul.addr %s260, 20
        %s262 = scalar_lea.vmem [#allocation2], %s261
        %p263 = pneg %p54
        %p264 = pneg %p51
        %p265 = pneg %p75
        %p266 = pneg %p72
        %p267 = pneg %p96
        %p268 = pneg %p93
        %p269 = pneg %p124
        %p270 = pneg %p121
        %s271 = sand.u32 %s111, 1
        %s272 = scalar_lea.sflag [#allocation4], %s271
        %s273 = sand.u32 %s111, 1
        %s274 = smul.addr %s273, 8
        %s275 = scalar_lea.vmem [#allocation3], %s274
        %p276 = pneg %p152
        %p277 = pneg %p149
        %p278 = scmp.lt.s32.totalorder %s23, 1
        %s279 = scalar_select %p278, %s23, 1
        %p280 = scmp.lt.s32.totalorder %s24, 1
        %s281 = scalar_select %p280, %s24, 1
        %s282 = smul.addr %s279, 2
        %s283 = sadd.s32 %s281, %s282
        %s284 = smul.addr %s283, 8
        %s285 = scalar_lea.vmem %s4, %s284
        %p286 = scmp.lt.s32.totalorder %s23, 1
        %s287 = scalar_select %p286, %s23, 1
        %p288 = scmp.lt.s32.totalorder %s24, 1
        %s289 = scalar_select %p288, %s24, 1
        %s290 = smul.addr %s287, 2
        %s291 = sadd.s32 %s289, %s290
        %s292 = smul.addr %s291, 8
        %s293 = scalar_lea.vmem %s4, %s292
        %v295 = vld [vmem:[%s255] sm:$0xf]
        %v296 = vld [vmem:[%s255 + $0x4] sm:$0xf]
        %v297 = vld [vmem:[%s255 + $0x8] sm:$0xf]
        %v298 = vld [vmem:[%s255 + $0xc] sm:$0xf]
        %v299 = vld [vmem:[%s255 + $0x10] sm:$0x3]
        %v300 = vld [vmem:[%s1] sm:$0xf]
        %v306 = vunpack.c.l.b16 %v295
        %v307 = vunpack.c.l.b16 %v296
        %v308 = vunpack.c.l.b16 %v297
        %v309 = vunpack.c.l.b16 %v298
        %v310 = vunpack.c.l.b16 %v299
        %v311 = vpack.c.b16 %v307, %v306
        %v312 = vpack.c.b16 %v309, %v308
        %v313 = vpack.c.b16 %v310, %v310
        %vm316 = vcmask 293888
        %v318 = vsel %vm316, %v300, 0
        %vm320 = vcmask 1041408
        %v322 = vsel %vm320, %v313, 0
        %324 = vmatpush.bf16.msra.mxu0 0
        %325 = vmatpush.bf16.msra.mxu0 0
        %326 = vmatpush.bf16.msra.mxu0 0
        %327 = vmatpush.bf16.msra.mxu0 0
        %328 = vmatpush.bf16.msra.mxu0 0
        %329 = vmatpush.bf16.msra.mxu0 %v322
        %330 = vmatpush.bf16.msra.mxu0 %v312
        %331 = vmatpush.bf16.msra.mxu0 %v311
        %332 = vmatmul.bf16.gmra.mxu0 %v318
        %v333 = vpop.f32.mrf.mxu0
        %v334 = vadd.f32 0.0, %v333
        %v335 = vpop.f32.mrf.mxu0
        %336 = vdwg.mxu0
        %v337 = vld [vmem:[%s2] sm:$0xff]
        %v338 = vunpack.c.l.bf16 %v295
        %v339 = vunpack.c.l.bf16 %v296
        %v340 = vunpack.c.l.bf16 %v297
        %v341 = vunpack.c.l.bf16 %v298
        %v342 = vunpack.c.l.bf16 %v299
        %v343 = vmul.f32 %v338, %v338
        %v344 = vmul.f32 %v339, %v339
        %v345 = vmul.f32 %v340, %v340
        %v346 = vmul.f32 %v341, %v341
        %v347 = vmul.f32 %v342, %v342
        %v348 = vadd.f32 %v343, %v344
        %v349 = vadd.f32 %v348, %v345
        %v350 = vadd.f32 %v349, %v346
        %vm351 = vcmask 1043456
        %v352 = vsel %vm351, %v347, 0.0
        %v353 = vadd.f32 %v350, %v352
        %v354 = vrot.slane %v353, 4
        %v355 = vadd.f32 %v353, %v354
        %v356 = vrot.slane %v355, 2
        %v357 = vadd.f32 %v355, %v356
        %v358 = vrot.slane %v357, 1
        %v359 = vadd.f32 %v357, %v358
        %v360 = vadd.f32 %v334, 2.0
        %v361 = vmul.f32 %v360, %v360
        %v362 = vmul.f32 %v360, %v361
        %364 = vset.pattern.permute.xlu0 1
        %365 = vperm.xlu0 %364, %v337
        %v366 = vpop.permute.xlu0 %365
        %v368 = vadd.f32 %v359, %v366
        %v369 = vmul.f32 %v334, 2.0
        %v370 = vsub.f32 %v368, %v369
        %v371 = vmax.f32 %v370, 0.0
        %v372 = vmul.f32 %v371, -1.0
        %v373 = vmul.f32 %v372, 1.442695
        %v374 = vpow.pop %v373
        %v375 = vsel %vm351, %v334, %v362
        %vm376 = vcmask 1045504
        %v377 = vsel %vm376, %v375, %v374
        %378 = vset.pattern.permute.xlu0 0
        %379 = vperm.xlu0 %378, %v337
        %v380 = vpop.permute.xlu0 %379
        %v382 = vadd.f32 %v377, %v380
        %383 = vst [vmem:[%s275] sm:$0xff] %v382
        %v384 = vlaneseq
        %v385 = vand.u32 %v384, 127
        %s386 = smul.u32 %s24, 128
        %v387 = vstv %s386
        %v388 = vadd.s32 %v385, %v387
        %vm389 = vcmp.lt.s32.totalorder %v388, 256
        %v390 = vsel %vm389, 1, 0
        %v391 = vcvt.s32.f32 %v390
        %v392 = vmul.f32 %v382, %v391
        %393 = vadd.xlane.f32.xlu0 %v392
        %v394 = vpop.xlane.xlu0 %393
        %v395 = vmul.f32 %v392, %v392
        %396 = vadd.xlane.f32.xlu0 %v395
        %v397 = vpop.xlane.xlu0 %396
        %vm398 = vcmask 7168
        %v399 = vsel %vm398, %v394, %v397
        %vm400 = vcmask 15360
        %401 = vst.msk [vmem:[%s293] sm:$0xff] %vm400, %v399
        %s402 = sand.u32 %s111, 1
        %s403 = scalar_lea.sflag [#allocation4], %s402
        %s404 = sand.u32 %s111, 1
        %s405 = smul.addr %s404, 8
        %s406 = scalar_lea.vmem [#allocation3], %s405
        %p407 = scmp.lt.s32.totalorder %s23, 1
        %s408 = scalar_select %p407, %s23, 1
        %p409 = scmp.lt.s32.totalorder %s24, 1
        %s410 = scalar_select %p409, %s24, 1
        %s411 = smul.addr %s408, 2
        %s412 = sadd.s32 %s410, %s411
        %s413 = smul.addr %s412, 8
        %s414 = scalar_lea.vmem %s4, %s413
        // Predicated region
        $region74: #{tpu_custom_call.1} parent=68 // pred_check
          %p415 = pneg %p121
        $region75: #{tpu_custom_call.1} parent=68 // pred_check_branch
          %417 = sbr.rel (%p415) target = $region77
        $region76: #{tpu_custom_call.1} parent=68 // pred_region
          %419 = vsyncadd %s403, 0
          %s420 = smul.addr %s23, 2
          %s421 = sadd.s32 %s24, %s420
          %s422 = smul.addr %s421, 8
          %s423 = scalar_lea.hbm %s3, %s422
          %s425 = sshll.u32 %s406, 4
          %s426 = int_to_ptr.vmem [resolvable:$true] %s425
          %s427 = sshll.u32 %s423, 4
          %s428 = int_to_ptr.hbm [resolvable:$true] %s427
          %430 = dma.vmem_to_hbm [thread:$0]  %s426, 128, %s428, %s403
        $region77: #{tpu_custom_call.1} parent=68 // pred_fallthru
          _
        // Predicated region
        $region78: #{tpu_custom_call.1} parent=68 // pred_check
          %p431 = pneg %p149
        $region79: #{tpu_custom_call.1} parent=68 // pred_check_branch
          %433 = sbr.rel (%p431) target = $region81
        $region80: #{tpu_custom_call.1} parent=68 // pred_region
          _
        $region81: #{tpu_custom_call.1} parent=68 // pred_fallthru
          _
      $region69: #{tpu_custom_call.1} parent=5 // pred_fallthru
        _
      %p434 = scmp.le.s32.totalorder 2, %s14
      // Predicated region
      $region82: #{tpu_custom_call.1} parent=5 // pred_check
        %p435 = pneg %p434
      $region83: #{tpu_custom_call.1} parent=5 // pred_check_branch
        %437 = sbr.rel (%p435) target = $region85
      $region84: #{tpu_custom_call.1} parent=5 // pred_region
        %s438 = ssub.s32 %s14, 2
        // Predicated region
        $region86: #{tpu_custom_call.1} parent=84 // pred_check
          %p439 = pneg %p127
        $region87: #{tpu_custom_call.1} parent=84 // pred_check_branch
          %441 = sbr.rel (%p439) target = $region89
        $region88: #{tpu_custom_call.1} parent=84 // pred_region
          %s442 = sand.u32 %s112, 1
          %s443 = scalar_lea.sflag [#allocation4], %s442
          %s444 = sand.u32 %s112, 1
          %s445 = smul.addr %s444, 8
          %s446 = scalar_lea.vmem [#allocation3], %s445
          %448 = dma.done %s443, 128
        $region89: #{tpu_custom_call.1} parent=84 // pred_fallthru
          _
        // Predicated region
        $region90: #{tpu_custom_call.1} parent=84 // pred_check
          %p449 = pneg %p155
        $region91: #{tpu_custom_call.1} parent=84 // pred_check_branch
          %451 = sbr.rel (%p449) target = $region93
        $region92: #{tpu_custom_call.1} parent=84 // pred_region
          %p452 = scmp.lt.s32.totalorder %s25, 1
          %s453 = scalar_select %p452, %s25, 1
          %p454 = scmp.lt.s32.totalorder %s26, 1
          %s455 = scalar_select %p454, %s26, 1
          %s456 = smul.addr %s453, 2
          %s457 = sadd.s32 %s455, %s456
          %s458 = smul.addr %s457, 8
          %s459 = scalar_lea.vmem %s4, %s458
        $region93: #{tpu_custom_call.1} parent=84 // pred_fallthru
          _
      $region85: #{tpu_custom_call.1} parent=5 // pred_fallthru
        _
    $region6: #{tpu_custom_call.1} parent=1 // loop_footer
      %s18 = sadd.s32 1, %s14
    $region7: #{tpu_custom_call.1} parent=1 // loop_footer_branch
      %13 = sbr.rel target = $region3
    $region8: #{tpu_custom_call.1} parent=1 // loop_exit
      _
    %460 = vsyncpa [#allocation4], 1
    %s461 = scalar_lea.sflag [#allocation4], 1
    %462 = vsyncpa %s461, 1

</llo_original>
